<compile_context>
chip_gen: v7x
topology: tpu7x:2x2x1
jax: 0.10.0
libtpu: 0.0.40
codegen_flags: <defaults>
</compile_context>

<pallas_src>
import jax
import jax.numpy as jnp
from jax.experimental import pallas as pl
from jax.experimental.pallas import tpu as pltpu


def _spec(block_shape, index_map, buffers=None):
    """BlockSpec helper; buffers=1 single-buffers grid-invariant operands."""
    if buffers is not None:
        try:
            return pl.BlockSpec(block_shape, index_map,
                                pipeline_mode=pl.Buffered(buffers))
        except (TypeError, AttributeError):
            pass  # fall back to default double-buffering
    return pl.BlockSpec(block_shape, index_map)


def _pick_tile(total, candidates, fits):
    """Largest candidate that divides `total` and fits the VMEM budget."""
    for t in candidates:
        if total % t == 0 and fits(t):
            return t
    return total  # monolithic fallback (always a legal block shape)


# ----------------------------------------------------------------------------
# Pass 1: projection  h = x @ W.T   over flattened [B*N, C] rows.
# ----------------------------------------------------------------------------
def _proj_kernel(x_ref, wt_ref, h_ref):
    h = jnp.dot(x_ref[...], wt_ref[...], preferred_element_type=jnp.float32)
    h_ref[...] = h.astype(h_ref.dtype)


def _project(x2d, wt):
    M, C = x2d.shape
    D = wt.shape[1]
    esz = jnp.dtype(x2d.dtype).itemsize

    def fits(tm):
        return 2 * (tm * C + tm * D) * esz + C * D * esz <= 12 * 2**20

    tm = _pick_tile(M, (1024, 512, 256, 128, 64, 32, 16, 8), fits)

    cost = pl.CostEstimate(
        flops=2 * M * C * D,
        transcendentals=0,
        bytes_accessed=(M * C + C * D) * esz + M * D * esz,
    )
    return pl.pallas_call(
        _proj_kernel,
        out_shape=jax.ShapeDtypeStruct((M, D), x2d.dtype),
        grid_spec=pltpu.PrefetchScalarGridSpec(
            num_scalar_prefetch=0,
            grid=(M // tm,),
            in_specs=[
                _spec((tm, C), lambda i: (i, 0)),
                _spec((C, D), lambda i: (0, 0), buffers=1),  # grid-invariant
            ],
            out_specs=_spec((tm, D), lambda i: (i, 0)),
        ),
        compiler_params=pltpu.CompilerParams(
            dimension_semantics=("parallel",),
        ),
        cost_estimate=cost,
    )(x2d, wt)


# ----------------------------------------------------------------------------
# Pass 2: attention over a (Tq, N) score tile per grid step.
# ----------------------------------------------------------------------------
def _attn_kernel(hq_ref, hk_ref, g_ref, b_ref, o_ref):
    # hq_ref: (1, Tq, D)  query-node features (matmul dtype)
    # hk_ref: (1, N,  D)  all-node features for this batch element
    # g_ref : (Tq, N)     graph rows for this query tile (f32)
    # b_ref : (1, D)      bias (f32)
    # o_ref : (1, Tq, D)  output tile (f32)
    hq = hq_ref[0]
    hk = hk_ref[0]

    # scores = hq @ hk^T without materializing a transpose (MXU-native).
    scores = jax.lax.dot_general(
        hq, hk, dimension_numbers=(((1,), (1,)), ((), ())),
        preferred_element_type=jnp.float32)               # (Tq, N) f32
    scores = scores * g_ref[...]
    # masked_fill_(scores == 0, -1e16): exact-zero semantics of the module.
    scores = jnp.where(scores == 0.0, jnp.float32(-1e16), scores)

    # Row softmax in f32.  Each query tile sees every key, so no online pass
    # is needed at these N; flash-style kv tiling only matters for huge N.
    m = jnp.max(scores, axis=-1, keepdims=True)
    e = jnp.exp(scores - m)
    denom = jnp.sum(e, axis=-1, keepdims=True)
    attn = e * pl.reciprocal(denom, approx=True)          # EUP reciprocal

    out = jnp.dot(attn.astype(hk.dtype), hk,
                  preferred_element_type=jnp.float32)     # (Tq, D) f32
    o_ref[0] = (out + b_ref[...]).astype(o_ref.dtype)


def graph_attention_layer(inputs, graph, W, b, *, matmul_dtype=jnp.bfloat16):
    """
    inputs: [B, N, C] f32; graph: [N, N] f32; W: [D, C] f32 (torch nn.Linear
    layout, out_c x in_c); b: [D] f32.  Returns [B, N, D] float32.

    matmul_dtype: MXU operand dtype.  bfloat16 doubles MXU throughput and
    halves VMEM/HBM traffic for x / W / h; accumulation and the whole
    mask + softmax path stay float32.  Pass jnp.float32 for f32-faithful math.
    """
    B, N, C = inputs.shape
    D = W.shape[0]
    graph = graph.astype(jnp.float32)
    b2 = b.astype(jnp.float32).reshape(1, D)

    # ---- Pass 1: projection with batch folded into the row dimension.
    x2d = inputs.reshape(B * N, C).astype(matmul_dtype)
    wt = W.T.astype(matmul_dtype)
    h = _project(x2d, wt).reshape(B, N, D)

    # ---- Pass 2: attention, tiled over the query-node dimension.
    # TODO(synk): for very large N the (1, N, D) key block would need kv
    # tiling (online softmax); at these graph sizes it fits VMEM comfortably.
    esz = jnp.dtype(matmul_dtype).itemsize

    def fits(tq):
        work = (2 * (tq * D + N * D) * esz   # hq + hk blocks, double-buffered
                + 2 * tq * N * 4             # graph block, double-buffered
                + 2 * tq * D * 4             # output block, double-buffered
                + 5 * tq * N * 4             # scores / exp / attn temporaries
                + 2 * tq * D * 4)            # f32 accum temporaries
        return work <= 12 * 2**20

    tq = _pick_tile(N, (128, 64, 32, 16, 8), fits)
    nq = N // tq

    est = (2 * (tq * D + N * D) * esz + 2 * tq * N * 4 + 2 * tq * D * 4
           + 5 * tq * N * 4 + 2 * tq * D * 4 + D * 4)
    # Explicit scoped-VMEM budget with headroom, kept below v7x's 64 MiB.
    vmem_limit = int(min(max(3 * est, 32 * 2**20), 48 * 2**20))

    cost = pl.CostEstimate(
        flops=4 * B * N * N * D,                 # scores + attn @ h
        transcendentals=B * N * N,               # exp
        bytes_accessed=(B * N * D * esz * (1 + nq)   # hk per batch + hq tiles
                        + B * N * N * 4              # graph tiles
                        + B * N * D * 4),            # output
    )

    return pl.pallas_call(
        _attn_kernel,
        out_shape=jax.ShapeDtypeStruct((B, N, D), jnp.float32),
        grid_spec=pltpu.PrefetchScalarGridSpec(
            num_scalar_prefetch=0,
            grid=(B, nq),
            in_specs=[
                _spec((1, tq, D), lambda bi, qi: (bi, qi, 0)),   # h query tile
                _spec((1, N, D), lambda bi, qi: (bi, 0, 0)),     # h, all nodes
                _spec((tq, N), lambda bi, qi: (qi, 0)),          # graph rows
                _spec((1, D), lambda bi, qi: (0, 0), buffers=1),  # bias
            ],
            out_specs=_spec((1, tq, D), lambda bi, qi: (bi, qi, 0)),
        ),
        compiler_params=pltpu.CompilerParams(
            dimension_semantics=("parallel", "parallel"),
            vmem_limit_bytes=vmem_limit,
        ),
        cost_estimate=cost,
    )(h, h, graph, b2)


if __name__ == "__main__":
    key = jax.random.PRNGKey(0)
    k_x, k_w, k_b, k_g = jax.random.split(key, 4)

    # Small but TPU-friendly shapes: N = 256 exercises two 128-row query tiles
    # per batch element, and D = 128 keeps the output stores lane-dense.
    B, N, in_c, out_c = 2, 256, 4, 128

    x = jax.random.normal(k_x, (B, N, in_c), dtype=jnp.float32)
    W = jax.random.normal(k_w, (out_c, in_c), dtype=jnp.float32)  # torch layout
    b = jax.random.normal(k_b, (out_c,), dtype=jnp.float32)
    # Sparse-ish adjacency with zeros so the masked_fill path is exercised.
    graph = (jax.random.uniform(k_g, (N, N)) > 0.5).astype(jnp.float32)

    def reference(matmul_dtype):
        """Pure-JAX reference with the same operand dtypes as the kernel."""
        xd = x.astype(matmul_dtype).reshape(B * N, in_c)
        wtd = W.T.astype(matmul_dtype)
        h = jnp.dot(xd, wtd, preferred_element_type=jnp.float32)
        h = h.astype(matmul_dtype).reshape(B, N, out_c)
        scores = jax.lax.dot_general(
            h, h, dimension_numbers=(((2,), (2,)), ((0,), (0,))),
            preferred_element_type=jnp.float32)
        scores = scores * graph[None]
        scores = jnp.where(scores == 0.0, jnp.float32(-1e16), scores)
        attn = jax.nn.softmax(scores, axis=2)
        out = jax.lax.dot_general(
            attn.astype(matmul_dtype), h,
            dimension_numbers=(((2,), (1,)), ((0,), (0,))),
            preferred_element_type=jnp.float32)
        return out + b

    # Float32 path: faithful to the PyTorch module's float32 forward.
    out_f32 = graph_attention_layer(x, graph, W, b, matmul_dtype=jnp.float32)
    jax.block_until_ready(out_f32)
    assert out_f32.shape == (B, N, out_c)
    assert out_f32.dtype == jnp.float32
    assert jnp.allclose(out_f32, reference(jnp.float32), atol=1e-2, rtol=1e-2), \
        "f32 kernel mismatch vs reference"

    # bf16-MXU path (f32 accumulation, f32 mask/softmax), checked against a
    # precision-matched reference.
    out_bf16 = graph_attention_layer(x, graph, W, b, matmul_dtype=jnp.bfloat16)
    jax.block_until_ready(out_bf16)
    assert out_bf16.shape == (B, N, out_c)
    assert jnp.allclose(out_bf16, reference(jnp.bfloat16), atol=2e-2, rtol=2e-2), \
        "bf16 kernel mismatch vs precision-matched reference"

    print("KERNEL_OK")
</pallas_src>

<mosaic_0001>
module attributes {stable_mosaic.version = 11 : i64} {
  func.func @_proj_kernel(%arg0: i32, %arg1: memref<512x4xf32, #tpu.memory_space<vmem>>, %arg2: memref<4x128xf32, #tpu.memory_space<vmem>>, %arg3: memref<512x128xf32, #tpu.memory_space<vmem>>) attributes {dimension_semantics = [#tpu.dimension_semantics<parallel>], iteration_bounds = array<i64: 1>, scalar_prefetch = 0 : i64, scratch_operands = 0 : i64, tpu.core_type = #tpu.core_type<tc>, window_params = [{transform_indices = @transform_0, window_bounds = array<i64: 512, 4>}, {pipeline_mode = #tpu.pipeline_mode<synchronous>, transform_indices = @transform_1, window_bounds = array<i64: 4, 128>}, {transform_indices = @transform_2, window_bounds = array<i64: 512, 128>}]} {
    %c0 = arith.constant 0 : index
    %c0_0 = arith.constant 0 : index
    %0 = vector.load %arg1[%c0, %c0_0] : memref<512x4xf32, #tpu.memory_space<vmem>>, vector<512x4xf32>
    %c0_1 = arith.constant 0 : index
    %c0_2 = arith.constant 0 : index
    %1 = vector.load %arg2[%c0_1, %c0_2] : memref<4x128xf32, #tpu.memory_space<vmem>>, vector<4x128xf32>
    %cst = arith.constant dense<0.000000e+00> : vector<512x128xf32>
    %2 = tpu.matmul %0, %1, %cst {dimension_numbers = #tpu.dot_dimension_numbers<[1], [0], [0], [1], [0, 0, 1, 1], [], []>} : vector<512x4xf32>, vector<4x128xf32>, vector<512x128xf32> -> vector<512x128xf32>
    %c0_3 = arith.constant 0 : index
    %c0_4 = arith.constant 0 : index
    %3 = vector.load %arg3[%c0_3, %c0_4] : memref<512x128xf32, #tpu.memory_space<vmem>>, vector<512x128xf32>
    tpu.vector_store %arg3[%c0_3, %c0_4], %2 {strides = array<i32>} : memref<512x128xf32, #tpu.memory_space<vmem>>, vector<512x128xf32>,
    return
  }
  func.func @transform_0(%arg0: i32) -> (i32, i32) {
    %c0_i32 = arith.constant 0 : i32
    %c0_i32_0 = arith.constant 0 : i32
    return %arg0, %c0_i32 : i32, i32
  }
  func.func @transform_1(%arg0: i32) -> (i32, i32) {
    %c0_i32 = arith.constant 0 : i32
    %c0_i32_0 = arith.constant 0 : i32
    %c0_i32_1 = arith.constant 0 : i32
    return %c0_i32, %c0_i32_0 : i32, i32
  }
  func.func @transform_2(%arg0: i32) -> (i32, i32) {
    %c0_i32 = arith.constant 0 : i32
    %c0_i32_0 = arith.constant 0 : i32
    return %arg0, %c0_i32 : i32, i32
  }
}

</mosaic_0001>

<llo_original>
// kernel: tpu_custom_call.1
$region0: #{tpu_custom_call.1}
  #allocation0 [shape = 'u32[]', space=smem, size = 0x4, offset = 0x4, fixed_abs, tag = 'smem constant byte address 0x4 - core index']
  #allocation1 [shape = 'u32[144,128]{1,0:T(1,128)}', space=vmem, size = 0x12000, scoped, tag = 'internal scratch']
  %s0 = inlined_call_operand.vmem [shape: f32[512,4], index: 0, kind: input, shape index: {}]
  %s1 = inlined_call_operand.vmem [shape: f32[4,128], index: 1, kind: input, shape index: {}]
  %s2 = inlined_call_operand.hbm [shape: f32[512,128], index: 2, kind: output, shape index: {}]
  %s3 = sld [smem:[#allocation0]]
  $region18: #{tpu_custom_call.1} parent=0
    _
  %s5 = ssub.s32 1, %s3
  %s6 = scalar_select 0, %s5, %s3
  $region1: #{tpu_custom_call.1} parent=0
    #allocation2 [shape = 'u8[262144]{0}', space=vmem, size = 0x40000, scoped, tag = 'output window, operand 0, single buffered']
    #allocation3 [shape = 's32[1]{0}', space=sflag, size = 0x4, scoped, tag = 'scoped memory for tpu_custom_call.1']
    %7 = vsyncpa [#allocation3], 0
    // Predicated region
    $region2: #{tpu_custom_call.1} parent=1 // pred_check
      _
    $region3: #{tpu_custom_call.1} parent=1 // pred_check_branch
      %9 = sbr.rel (0) target = $region5
    $region4: #{tpu_custom_call.1} parent=1 // pred_region
      _
    $region5: #{tpu_custom_call.1} parent=1 // pred_fallthru
      _
    // Predicated region
    $region6: #{tpu_custom_call.1} parent=1 // pred_check
      _
    $region7: #{tpu_custom_call.1} parent=1 // pred_check_branch
      %11 = sbr.rel (0) target = $region9
    $region8: #{tpu_custom_call.1} parent=1 // pred_region
      _
    $region9: #{tpu_custom_call.1} parent=1 // pred_fallthru
      _
    %v12 = vld [vmem:[%s0] sm:$0xff]
    %v13 = vld [vmem:[%s0 + $0x8] sm:$0xff]
    %v14 = vld [vmem:[%s0 + $0x10] sm:$0xff]
    %v15 = vld [vmem:[%s0 + $0x18] sm:$0xff]
    %v16 = vld [vmem:[%s0 + $0x20] sm:$0xff]
    %v17 = vld [vmem:[%s0 + $0x28] sm:$0xff]
    %v18 = vld [vmem:[%s0 + $0x30] sm:$0xff]
    %v19 = vld [vmem:[%s0 + $0x38] sm:$0xff]
    %v20 = vld [vmem:[%s0 + $0x40] sm:$0xff]
    %v21 = vld [vmem:[%s0 + $0x48] sm:$0xff]
    %v22 = vld [vmem:[%s0 + $0x50] sm:$0xff]
    %v23 = vld [vmem:[%s0 + $0x58] sm:$0xff]
    %v24 = vld [vmem:[%s0 + $0x60] sm:$0xff]
    %v25 = vld [vmem:[%s0 + $0x68] sm:$0xff]
    %v26 = vld [vmem:[%s0 + $0x70] sm:$0xff]
    %v27 = vld [vmem:[%s0 + $0x78] sm:$0xff]
    %v28 = vld [vmem:[%s0 + $0x80] sm:$0xff]
    %v29 = vld [vmem:[%s0 + $0x88] sm:$0xff]
    %v30 = vld [vmem:[%s0 + $0x90] sm:$0xff]
    %v31 = vld [vmem:[%s0 + $0x98] sm:$0xff]
    %v32 = vld [vmem:[%s0 + $0xa0] sm:$0xff]
    %v33 = vld [vmem:[%s0 + $0xa8] sm:$0xff]
    %v34 = vld [vmem:[%s0 + $0xb0] sm:$0xff]
    %v35 = vld [vmem:[%s0 + $0xb8] sm:$0xff]
    %v36 = vld [vmem:[%s0 + $0xc0] sm:$0xff]
    %v37 = vld [vmem:[%s0 + $0xc8] sm:$0xff]
    %v38 = vld [vmem:[%s0 + $0xd0] sm:$0xff]
    %v39 = vld [vmem:[%s0 + $0xd8] sm:$0xff]
    %v40 = vld [vmem:[%s0 + $0xe0] sm:$0xff]
    %v41 = vld [vmem:[%s0 + $0xe8] sm:$0xff]
    %v42 = vld [vmem:[%s0 + $0xf0] sm:$0xff]
    %v43 = vld [vmem:[%s0 + $0xf8] sm:$0xff]
    %v44 = vld [vmem:[%s0 + $0x100] sm:$0xff]
    %v45 = vld [vmem:[%s0 + $0x108] sm:$0xff]
    %v46 = vld [vmem:[%s0 + $0x110] sm:$0xff]
    %v47 = vld [vmem:[%s0 + $0x118] sm:$0xff]
    %v48 = vld [vmem:[%s0 + $0x120] sm:$0xff]
    %v49 = vld [vmem:[%s0 + $0x128] sm:$0xff]
    %v50 = vld [vmem:[%s0 + $0x130] sm:$0xff]
    %v51 = vld [vmem:[%s0 + $0x138] sm:$0xff]
    %v52 = vld [vmem:[%s0 + $0x140] sm:$0xff]
    %v53 = vld [vmem:[%s0 + $0x148] sm:$0xff]
    %v54 = vld [vmem:[%s0 + $0x150] sm:$0xff]
    %v55 = vld [vmem:[%s0 + $0x158] sm:$0xff]
    %v56 = vld [vmem:[%s0 + $0x160] sm:$0xff]
    %v57 = vld [vmem:[%s0 + $0x168] sm:$0xff]
    %v58 = vld [vmem:[%s0 + $0x170] sm:$0xff]
    %v59 = vld [vmem:[%s0 + $0x178] sm:$0xff]
    %v60 = vld [vmem:[%s0 + $0x180] sm:$0xff]
    %v61 = vld [vmem:[%s0 + $0x188] sm:$0xff]
    %v62 = vld [vmem:[%s0 + $0x190] sm:$0xff]
    %v63 = vld [vmem:[%s0 + $0x198] sm:$0xff]
    %v64 = vld [vmem:[%s0 + $0x1a0] sm:$0xff]
    %v65 = vld [vmem:[%s0 + $0x1a8] sm:$0xff]
    %v66 = vld [vmem:[%s0 + $0x1b0] sm:$0xff]
    %v67 = vld [vmem:[%s0 + $0x1b8] sm:$0xff]
    %v68 = vld [vmem:[%s0 + $0x1c0] sm:$0xff]
    %v69 = vld [vmem:[%s0 + $0x1c8] sm:$0xff]
    %v70 = vld [vmem:[%s0 + $0x1d0] sm:$0xff]
    %v71 = vld [vmem:[%s0 + $0x1d8] sm:$0xff]
    %v72 = vld [vmem:[%s0 + $0x1e0] sm:$0xff]
    %v73 = vld [vmem:[%s0 + $0x1e8] sm:$0xff]
    %v74 = vld [vmem:[%s0 + $0x1f0] sm:$0xff]
    %v75 = vld [vmem:[%s0 + $0x1f8] sm:$0xff]
    %v76 = vld [vmem:[%s1] sm:$0xf]
    %vm77 = vcmask 31744
    %v79 = vsel %vm77, %v12, 0
    %v82 = vsel %vm77, %v13, 0
    %v85 = vsel %vm77, %v14, 0
    %v88 = vsel %vm77, %v15, 0
    %v91 = vsel %vm77, %v16, 0
    %v94 = vsel %vm77, %v17, 0
    %v97 = vsel %vm77, %v18, 0
    %v100 = vsel %vm77, %v19, 0
    %v103 = vsel %vm77, %v20, 0
    %v106 = vsel %vm77, %v21, 0
    %v109 = vsel %vm77, %v22, 0
    %v112 = vsel %vm77, %v23, 0
    %v115 = vsel %vm77, %v24, 0
    %v118 = vsel %vm77, %v25, 0
    %v121 = vsel %vm77, %v26, 0
    %v124 = vsel %vm77, %v27, 0
    %v127 = vsel %vm77, %v28, 0
    %v130 = vsel %vm77, %v29, 0
    %v133 = vsel %vm77, %v30, 0
    %v136 = vsel %vm77, %v31, 0
    %v139 = vsel %vm77, %v32, 0
    %v142 = vsel %vm77, %v33, 0
    %v145 = vsel %vm77, %v34, 0
    %v148 = vsel %vm77, %v35, 0
    %v151 = vsel %vm77, %v36, 0
    %v154 = vsel %vm77, %v37, 0
    %v157 = vsel %vm77, %v38, 0
    %v160 = vsel %vm77, %v39, 0
    %v163 = vsel %vm77, %v40, 0
    %v166 = vsel %vm77, %v41, 0
    %v169 = vsel %vm77, %v42, 0
    %v172 = vsel %vm77, %v43, 0
    %v175 = vsel %vm77, %v44, 0
    %v178 = vsel %vm77, %v45, 0
    %v181 = vsel %vm77, %v46, 0
    %v184 = vsel %vm77, %v47, 0
    %v187 = vsel %vm77, %v48, 0
    %v190 = vsel %vm77, %v49, 0
    %v193 = vsel %vm77, %v50, 0
    %v196 = vsel %vm77, %v51, 0
    %v199 = vsel %vm77, %v52, 0
    %v202 = vsel %vm77, %v53, 0
    %v205 = vsel %vm77, %v54, 0
    %v208 = vsel %vm77, %v55, 0
    %v211 = vsel %vm77, %v56, 0
    %v214 = vsel %vm77, %v57, 0
    %v217 = vsel %vm77, %v58, 0
    %v220 = vsel %vm77, %v59, 0
    %v223 = vsel %vm77, %v60, 0
    %v226 = vsel %vm77, %v61, 0
    %v229 = vsel %vm77, %v62, 0
    %v232 = vsel %vm77, %v63, 0
    %v235 = vsel %vm77, %v64, 0
    %v238 = vsel %vm77, %v65, 0
    %v241 = vsel %vm77, %v66, 0
    %v244 = vsel %vm77, %v67, 0
    %v247 = vsel %vm77, %v68, 0
    %v250 = vsel %vm77, %v69, 0
    %v253 = vsel %vm77, %v70, 0
    %v256 = vsel %vm77, %v71, 0
    %v259 = vsel %vm77, %v72, 0
    %v262 = vsel %vm77, %v73, 0
    %v265 = vsel %vm77, %v74, 0
    %v268 = vsel %vm77, %v75, 0
    %vm270 = vcmask 1043456
    %v272 = vsel %vm270, %v76, 0
    %274 = vmatprep.subr.mxu0 0.0
    %275 = vmatpush1.msra.mxu0 %v272
    %276 = vmatprep.subr.mxu0 0.0
    %277 = vmatpush1.msra.mxu0 0.0
    %278 = vmatprep.subr.mxu0 0.0
    %279 = vmatpush1.msra.mxu0 0.0
    %280 = vmatprep.subr.mxu0 0.0
    %281 = vmatpush1.msra.mxu0 0.0
    %282 = vmatprep.subr.mxu0 0.0
    %283 = vmatpush1.msra.mxu0 0.0
    %284 = vmatprep.subr.mxu0 0.0
    %285 = vmatpush1.msra.mxu0 0.0
    %286 = vmatprep.subr.mxu0 0.0
    %287 = vmatpush1.msra.mxu0 0.0
    %288 = vmatprep.subr.mxu0 0.0
    %289 = vmatpush1.msra.mxu0 0.0
    %290 = vmatprep.subr.mxu0 0.0
    %291 = vmatpush1.msra.mxu0 0.0
    %292 = vmatprep.subr.mxu0 0.0
    %293 = vmatpush1.msra.mxu0 0.0
    %294 = vmatprep.subr.mxu0 0.0
    %295 = vmatpush1.msra.mxu0 0.0
    %296 = vmatprep.subr.mxu0 0.0
    %297 = vmatpush1.msra.mxu0 0.0
    %298 = vmatprep.subr.mxu0 0.0
    %299 = vmatpush1.msra.mxu0 0.0
    %300 = vmatprep.subr.mxu0 0.0
    %301 = vmatpush1.msra.mxu0 0.0
    %302 = vmatprep.subr.mxu0 0.0
    %303 = vmatpush1.msra.mxu0 0.0
    %304 = vmatprep.subr.mxu0 0.0
    %305 = vmatpush1.msra.mxu0 0.0
    %306 = vmatprep.subr.mxu0 0.0
    %307 = vmatpush1.msra.mxu0 0.0
    %308 = vmatprep.subr.mxu0 0.0
    %309 = vmatpush1.msra.mxu0 0.0
    %310 = vmatprep.subr.mxu0 0.0
    %311 = vmatpush1.msra.mxu0 0.0
    %312 = vmatprep.subr.mxu0 0.0
    %313 = vmatpush1.msra.mxu0 0.0
    %314 = vmatprep.subr.mxu0 0.0
    %315 = vmatpush1.msra.mxu0 0.0
    %316 = vmatprep.subr.mxu0 0.0
    %317 = vmatpush1.msra.mxu0 0.0
    %318 = vmatprep.subr.mxu0 0.0
    %319 = vmatpush1.msra.mxu0 0.0
    %320 = vmatprep.subr.mxu0 0.0
    %321 = vmatpush1.msra.mxu0 0.0
    %322 = vmatprep.subr.mxu0 0.0
    %323 = vmatpush1.msra.mxu0 0.0
    %324 = vmatprep.subr.mxu0 0.0
    %325 = vmatpush1.msra.mxu0 0.0
    %326 = vmatprep.subr.mxu0 0.0
    %327 = vmatpush1.msra.mxu0 0.0
    %328 = vmatprep.subr.mxu0 0.0
    %329 = vmatpush1.msra.mxu0 0.0
    %330 = vmatprep.subr.mxu0 0.0
    %331 = vmatpush1.msra.mxu0 0.0
    %332 = vmatprep.subr.mxu0 0.0
    %333 = vmatpush1.msra.mxu0 0.0
    %334 = vmatprep.subr.mxu0 0.0
    %335 = vmatpush1.msra.mxu0 0.0
    %336 = vmatprep.subr.mxu0 0.0
    %337 = vmatpush1.msra.mxu0 0.0
    %338 = vmatprep.mubr.f32.mxu0 0.0
    %339 = vmatmul.mubr.f32.gmra.mrb[0].mxu0 %v79
    %v340 = vpop.f32.mrb[0].mxu0
    %v341 = vadd.f32 0.0, %v340
    %v342 = vpop.f32.mrb[0].mxu0
    %343 = vmatprep.mubr.f32.mxu0 0.0
    %344 = vmatmul.mubr.f32.gmra.mrb[0].mxu0 %v82
    %v345 = vpop.f32.mrb[0].mxu0
    %v346 = vadd.f32 0.0, %v345
    %v347 = vpop.f32.mrb[0].mxu0
    %348 = vmatprep.mubr.f32.mxu0 0.0
    %349 = vmatmul.mubr.f32.gmra.mrb[0].mxu0 %v85
    %v350 = vpop.f32.mrb[0].mxu0
    %v351 = vadd.f32 0.0, %v350
    %v352 = vpop.f32.mrb[0].mxu0
    %353 = vmatprep.mubr.f32.mxu0 0.0
    %354 = vmatmul.mubr.f32.gmra.mrb[0].mxu0 %v88
    %v355 = vpop.f32.mrb[0].mxu0
    %v356 = vadd.f32 0.0, %v355
    %v357 = vpop.f32.mrb[0].mxu0
    %358 = vmatprep.mubr.f32.mxu0 0.0
    %359 = vmatmul.mubr.f32.gmra.mrb[0].mxu0 %v91
    %v360 = vpop.f32.mrb[0].mxu0
    %v361 = vadd.f32 0.0, %v360
    %v362 = vpop.f32.mrb[0].mxu0
    %363 = vmatprep.mubr.f32.mxu0 0.0
    %364 = vmatmul.mubr.f32.gmra.mrb[0].mxu0 %v94
    %v365 = vpop.f32.mrb[0].mxu0
    %v366 = vadd.f32 0.0, %v365
    %v367 = vpop.f32.mrb[0].mxu0
    %368 = vmatprep.mubr.f32.mxu0 0.0
    %369 = vmatmul.mubr.f32.gmra.mrb[0].mxu0 %v97
    %v370 = vpop.f32.mrb[0].mxu0
    %v371 = vadd.f32 0.0, %v370
    %v372 = vpop.f32.mrb[0].mxu0
    %373 = vmatprep.mubr.f32.mxu0 0.0
    %374 = vmatmul.mubr.f32.gmra.mrb[0].mxu0 %v100
    %v375 = vpop.f32.mrb[0].mxu0
    %v376 = vadd.f32 0.0, %v375
    %v377 = vpop.f32.mrb[0].mxu0
    %378 = vmatprep.mubr.f32.mxu0 0.0
    %379 = vmatmul.mubr.f32.gmra.mrb[0].mxu0 %v103
    %v380 = vpop.f32.mrb[0].mxu0
    %v381 = vadd.f32 0.0, %v380
    %v382 = vpop.f32.mrb[0].mxu0
    %383 = vmatprep.mubr.f32.mxu0 0.0
    %384 = vmatmul.mubr.f32.gmra.mrb[0].mxu0 %v106
    %v385 = vpop.f32.mrb[0].mxu0
    %v386 = vadd.f32 0.0, %v385
    %v387 = vpop.f32.mrb[0].mxu0
    %388 = vmatprep.mubr.f32.mxu0 0.0
    %389 = vmatmul.mubr.f32.gmra.mrb[0].mxu0 %v109
    %v390 = vpop.f32.mrb[0].mxu0
    %v391 = vadd.f32 0.0, %v390
    %v392 = vpop.f32.mrb[0].mxu0
    %393 = vmatprep.mubr.f32.mxu0 0.0
    %394 = vmatmul.mubr.f32.gmra.mrb[0].mxu0 %v112
    %v395 = vpop.f32.mrb[0].mxu0
    %v396 = vadd.f32 0.0, %v395
    %v397 = vpop.f32.mrb[0].mxu0
    %398 = vmatprep.mubr.f32.mxu0 0.0
    %399 = vmatmul.mubr.f32.gmra.mrb[0].mxu0 %v115
    %v400 = vpop.f32.mrb[0].mxu0
    %v401 = vadd.f32 0.0, %v400
    %v402 = vpop.f32.mrb[0].mxu0
    %403 = vmatprep.mubr.f32.mxu0 0.0
    %404 = vmatmul.mubr.f32.gmra.mrb[0].mxu0 %v118
    %v405 = vpop.f32.mrb[0].mxu0
    %v406 = vadd.f32 0.0, %v405
    %v407 = vpop.f32.mrb[0].mxu0
    %408 = vmatprep.mubr.f32.mxu0 0.0
    %409 = vmatmul.mubr.f32.gmra.mrb[0].mxu0 %v121
    %v410 = vpop.f32.mrb[0].mxu0
    %v411 = vadd.f32 0.0, %v410
    %v412 = vpop.f32.mrb[0].mxu0
    %413 = vmatprep.mubr.f32.mxu0 0.0
    %414 = vmatmul.mubr.f32.gmra.mrb[0].mxu0 %v124
    %v415 = vpop.f32.mrb[0].mxu0
    %v416 = vadd.f32 0.0, %v415
    %v417 = vpop.f32.mrb[0].mxu0
    %418 = vmatprep.mubr.f32.mxu0 0.0
    %419 = vmatmul.mubr.f32.gmra.mrb[0].mxu0 %v127
    %v420 = vpop.f32.mrb[0].mxu0
    %v421 = vadd.f32 0.0, %v420
    %v422 = vpop.f32.mrb[0].mxu0
    %423 = vmatprep.mubr.f32.mxu0 0.0
    %424 = vmatmul.mubr.f32.gmra.mrb[0].mxu0 %v130
    %v425 = vpop.f32.mrb[0].mxu0
    %v426 = vadd.f32 0.0, %v425
    %v427 = vpop.f32.mrb[0].mxu0
    %428 = vmatprep.mubr.f32.mxu0 0.0
    %429 = vmatmul.mubr.f32.gmra.mrb[0].mxu0 %v133
    %v430 = vpop.f32.mrb[0].mxu0
    %v431 = vadd.f32 0.0, %v430
    %v432 = vpop.f32.mrb[0].mxu0
    %433 = vmatprep.mubr.f32.mxu0 0.0
    %434 = vmatmul.mubr.f32.gmra.mrb[0].mxu0 %v136
    %v435 = vpop.f32.mrb[0].mxu0
    %v436 = vadd.f32 0.0, %v435
    %v437 = vpop.f32.mrb[0].mxu0
    %438 = vmatprep.mubr.f32.mxu0 0.0
    %439 = vmatmul.mubr.f32.gmra.mrb[0].mxu0 %v139
    %v440 = vpop.f32.mrb[0].mxu0
    %v441 = vadd.f32 0.0, %v440
    %v442 = vpop.f32.mrb[0].mxu0
    %443 = vmatprep.mubr.f32.mxu0 0.0
    %444 = vmatmul.mubr.f32.gmra.mrb[0].mxu0 %v142
    %v445 = vpop.f32.mrb[0].mxu0
    %v446 = vadd.f32 0.0, %v445
    %v447 = vpop.f32.mrb[0].mxu0
    %448 = vmatprep.mubr.f32.mxu0 0.0
    %449 = vmatmul.mubr.f32.gmra.mrb[0].mxu0 %v145
    %v450 = vpop.f32.mrb[0].mxu0
    %v451 = vadd.f32 0.0, %v450
    %v452 = vpop.f32.mrb[0].mxu0
    %453 = vmatprep.mubr.f32.mxu0 0.0
    %454 = vmatmul.mubr.f32.gmra.mrb[0].mxu0 %v148
    %v455 = vpop.f32.mrb[0].mxu0
    %v456 = vadd.f32 0.0, %v455
    %v457 = vpop.f32.mrb[0].mxu0
    %458 = vmatprep.mubr.f32.mxu0 0.0
    %459 = vmatmul.mubr.f32.gmra.mrb[0].mxu0 %v151
    %v460 = vpop.f32.mrb[0].mxu0
    %v461 = vadd.f32 0.0, %v460
    %v462 = vpop.f32.mrb[0].mxu0
    %463 = vmatprep.mubr.f32.mxu0 0.0
    %464 = vmatmul.mubr.f32.gmra.mrb[0].mxu0 %v154
    %v465 = vpop.f32.mrb[0].mxu0
    %v466 = vadd.f32 0.0, %v465
    %v467 = vpop.f32.mrb[0].mxu0
    %468 = vmatprep.mubr.f32.mxu0 0.0
    %469 = vmatmul.mubr.f32.gmra.mrb[0].mxu0 %v157
    %v470 = vpop.f32.mrb[0].mxu0
    %v471 = vadd.f32 0.0, %v470
    %v472 = vpop.f32.mrb[0].mxu0
    %473 = vmatprep.mubr.f32.mxu0 0.0
    %474 = vmatmul.mubr.f32.gmra.mrb[0].mxu0 %v160
    %v475 = vpop.f32.mrb[0].mxu0
    %v476 = vadd.f32 0.0, %v475
    %v477 = vpop.f32.mrb[0].mxu0
    %478 = vmatprep.mubr.f32.mxu0 0.0
    %479 = vmatmul.mubr.f32.gmra.mrb[0].mxu0 %v163
    %v480 = vpop.f32.mrb[0].mxu0
    %v481 = vadd.f32 0.0, %v480
    %v482 = vpop.f32.mrb[0].mxu0
    %483 = vmatprep.mubr.f32.mxu0 0.0
    %484 = vmatmul.mubr.f32.gmra.mrb[0].mxu0 %v166
    %v485 = vpop.f32.mrb[0].mxu0
    %v486 = vadd.f32 0.0, %v485
    %v487 = vpop.f32.mrb[0].mxu0
    %488 = vmatprep.mubr.f32.mxu0 0.0
    %489 = vmatmul.mubr.f32.gmra.mrb[0].mxu0 %v169
    %v490 = vpop.f32.mrb[0].mxu0
    %v491 = vadd.f32 0.0, %v490
    %v492 = vpop.f32.mrb[0].mxu0
    %493 = vmatprep.mubr.f32.mxu0 0.0
    %494 = vmatmul.mubr.f32.gmra.mrb[0].mxu0 %v172
    %v495 = vpop.f32.mrb[0].mxu0
    %v496 = vadd.f32 0.0, %v495
    %v497 = vpop.f32.mrb[0].mxu0
    %498 = vmatprep.mubr.f32.mxu0 0.0
    %499 = vmatmul.mubr.f32.gmra.mrb[0].mxu0 %v175
    %v500 = vpop.f32.mrb[0].mxu0
    %v501 = vadd.f32 0.0, %v500
    %v502 = vpop.f32.mrb[0].mxu0
    %503 = vmatprep.mubr.f32.mxu0 0.0
    %504 = vmatmul.mubr.f32.gmra.mrb[0].mxu0 %v178
    %v505 = vpop.f32.mrb[0].mxu0
    %v506 = vadd.f32 0.0, %v505
    %v507 = vpop.f32.mrb[0].mxu0
    %508 = vmatprep.mubr.f32.mxu0 0.0
    %509 = vmatmul.mubr.f32.gmra.mrb[0].mxu0 %v181
    %v510 = vpop.f32.mrb[0].mxu0
    %v511 = vadd.f32 0.0, %v510
    %v512 = vpop.f32.mrb[0].mxu0
    %513 = vmatprep.mubr.f32.mxu0 0.0
    %514 = vmatmul.mubr.f32.gmra.mrb[0].mxu0 %v184
    %v515 = vpop.f32.mrb[0].mxu0
    %v516 = vadd.f32 0.0, %v515
    %v517 = vpop.f32.mrb[0].mxu0
    %518 = vmatprep.mubr.f32.mxu0 0.0
    %519 = vmatmul.mubr.f32.gmra.mrb[0].mxu0 %v187
    %v520 = vpop.f32.mrb[0].mxu0
    %v521 = vadd.f32 0.0, %v520
    %v522 = vpop.f32.mrb[0].mxu0
    %523 = vmatprep.mubr.f32.mxu0 0.0
    %524 = vmatmul.mubr.f32.gmra.mrb[0].mxu0 %v190
    %v525 = vpop.f32.mrb[0].mxu0
    %v526 = vadd.f32 0.0, %v525
    %v527 = vpop.f32.mrb[0].mxu0
    %528 = vmatprep.mubr.f32.mxu0 0.0
    %529 = vmatmul.mubr.f32.gmra.mrb[0].mxu0 %v193
    %v530 = vpop.f32.mrb[0].mxu0
    %v531 = vadd.f32 0.0, %v530
    %v532 = vpop.f32.mrb[0].mxu0
    %533 = vmatprep.mubr.f32.mxu0 0.0
    %534 = vmatmul.mubr.f32.gmra.mrb[0].mxu0 %v196
    %v535 = vpop.f32.mrb[0].mxu0
    %v536 = vadd.f32 0.0, %v535
    %v537 = vpop.f32.mrb[0].mxu0
    %538 = vmatprep.mubr.f32.mxu0 0.0
    %539 = vmatmul.mubr.f32.gmra.mrb[0].mxu0 %v199
    %v540 = vpop.f32.mrb[0].mxu0
    %v541 = vadd.f32 0.0, %v540
    %v542 = vpop.f32.mrb[0].mxu0
    %543 = vmatprep.mubr.f32.mxu0 0.0
    %544 = vmatmul.mubr.f32.gmra.mrb[0].mxu0 %v202
    %v545 = vpop.f32.mrb[0].mxu0
    %v546 = vadd.f32 0.0, %v545
    %v547 = vpop.f32.mrb[0].mxu0
    %548 = vmatprep.mubr.f32.mxu0 0.0
    %549 = vmatmul.mubr.f32.gmra.mrb[0].mxu0 %v205
    %v550 = vpop.f32.mrb[0].mxu0
    %v551 = vadd.f32 0.0, %v550
    %v552 = vpop.f32.mrb[0].mxu0
    %553 = vmatprep.mubr.f32.mxu0 0.0
    %554 = vmatmul.mubr.f32.gmra.mrb[0].mxu0 %v208
    %v555 = vpop.f32.mrb[0].mxu0
    %v556 = vadd.f32 0.0, %v555
    %v557 = vpop.f32.mrb[0].mxu0
    %558 = vmatprep.mubr.f32.mxu0 0.0
    %559 = vmatmul.mubr.f32.gmra.mrb[0].mxu0 %v211
    %v560 = vpop.f32.mrb[0].mxu0
    %v561 = vadd.f32 0.0, %v560
    %v562 = vpop.f32.mrb[0].mxu0
    %563 = vmatprep.mubr.f32.mxu0 0.0
    %564 = vmatmul.mubr.f32.gmra.mrb[0].mxu0 %v214
    %v565 = vpop.f32.mrb[0].mxu0
    %v566 = vadd.f32 0.0, %v565
    %v567 = vpop.f32.mrb[0].mxu0
    %568 = vmatprep.mubr.f32.mxu0 0.0
    %569 = vmatmul.mubr.f32.gmra.mrb[0].mxu0 %v217
    %v570 = vpop.f32.mrb[0].mxu0
    %v571 = vadd.f32 0.0, %v570
    %v572 = vpop.f32.mrb[0].mxu0
    %573 = vmatprep.mubr.f32.mxu0 0.0
    %574 = vmatmul.mubr.f32.gmra.mrb[0].mxu0 %v220
    %v575 = vpop.f32.mrb[0].mxu0
    %v576 = vadd.f32 0.0, %v575
    %v577 = vpop.f32.mrb[0].mxu0
    %578 = vmatprep.mubr.f32.mxu0 0.0
    %579 = vmatmul.mubr.f32.gmra.mrb[0].mxu0 %v223
    %v580 = vpop.f32.mrb[0].mxu0
    %v581 = vadd.f32 0.0, %v580
    %v582 = vpop.f32.mrb[0].mxu0
    %583 = vmatprep.mubr.f32.mxu0 0.0
    %584 = vmatmul.mubr.f32.gmra.mrb[0].mxu0 %v226
    %v585 = vpop.f32.mrb[0].mxu0
    %v586 = vadd.f32 0.0, %v585
    %v587 = vpop.f32.mrb[0].mxu0
    %588 = vmatprep.mubr.f32.mxu0 0.0
    %589 = vmatmul.mubr.f32.gmra.mrb[0].mxu0 %v229
    %v590 = vpop.f32.mrb[0].mxu0
    %v591 = vadd.f32 0.0, %v590
    %v592 = vpop.f32.mrb[0].mxu0
    %593 = vmatprep.mubr.f32.mxu0 0.0
    %594 = vmatmul.mubr.f32.gmra.mrb[0].mxu0 %v232
    %v595 = vpop.f32.mrb[0].mxu0
    %v596 = vadd.f32 0.0, %v595
    %v597 = vpop.f32.mrb[0].mxu0
    %598 = vmatprep.mubr.f32.mxu0 0.0
    %599 = vmatmul.mubr.f32.gmra.mrb[0].mxu0 %v235
    %v600 = vpop.f32.mrb[0].mxu0
    %v601 = vadd.f32 0.0, %v600
    %v602 = vpop.f32.mrb[0].mxu0
    %603 = vmatprep.mubr.f32.mxu0 0.0
    %604 = vmatmul.mubr.f32.gmra.mrb[0].mxu0 %v238
    %v605 = vpop.f32.mrb[0].mxu0
    %v606 = vadd.f32 0.0, %v605
    %v607 = vpop.f32.mrb[0].mxu0
    %608 = vmatprep.mubr.f32.mxu0 0.0
    %609 = vmatmul.mubr.f32.gmra.mrb[0].mxu0 %v241
    %v610 = vpop.f32.mrb[0].mxu0
    %v611 = vadd.f32 0.0, %v610
    %v612 = vpop.f32.mrb[0].mxu0
    %613 = vmatprep.mubr.f32.mxu0 0.0
    %614 = vmatmul.mubr.f32.gmra.mrb[0].mxu0 %v244
    %v615 = vpop.f32.mrb[0].mxu0
    %v616 = vadd.f32 0.0, %v615
    %v617 = vpop.f32.mrb[0].mxu0
    %618 = vmatprep.mubr.f32.mxu0 0.0
    %619 = vmatmul.mubr.f32.gmra.mrb[0].mxu0 %v247
    %v620 = vpop.f32.mrb[0].mxu0
    %v621 = vadd.f32 0.0, %v620
    %v622 = vpop.f32.mrb[0].mxu0
    %623 = vmatprep.mubr.f32.mxu0 0.0
    %624 = vmatmul.mubr.f32.gmra.mrb[0].mxu0 %v250
    %v625 = vpop.f32.mrb[0].mxu0
    %v626 = vadd.f32 0.0, %v625
    %v627 = vpop.f32.mrb[0].mxu0
    %628 = vmatprep.mubr.f32.mxu0 0.0
    %629 = vmatmul.mubr.f32.gmra.mrb[0].mxu0 %v253
    %v630 = vpop.f32.mrb[0].mxu0
    %v631 = vadd.f32 0.0, %v630
    %v632 = vpop.f32.mrb[0].mxu0
    %633 = vmatprep.mubr.f32.mxu0 0.0
    %634 = vmatmul.mubr.f32.gmra.mrb[0].mxu0 %v256
    %v635 = vpop.f32.mrb[0].mxu0
    %v636 = vadd.f32 0.0, %v635
    %v637 = vpop.f32.mrb[0].mxu0
    %638 = vmatprep.mubr.f32.mxu0 0.0
    %639 = vmatmul.mubr.f32.gmra.mrb[0].mxu0 %v259
    %v640 = vpop.f32.mrb[0].mxu0
    %v641 = vadd.f32 0.0, %v640
    %v642 = vpop.f32.mrb[0].mxu0
    %643 = vmatprep.mubr.f32.mxu0 0.0
    %644 = vmatmul.mubr.f32.gmra.mrb[0].mxu0 %v262
    %v645 = vpop.f32.mrb[0].mxu0
    %v646 = vadd.f32 0.0, %v645
    %v647 = vpop.f32.mrb[0].mxu0
    %648 = vmatprep.mubr.f32.mxu0 0.0
    %649 = vmatmul.mubr.f32.gmra.mrb[0].mxu0 %v265
    %v650 = vpop.f32.mrb[0].mxu0
    %v651 = vadd.f32 0.0, %v650
    %v652 = vpop.f32.mrb[0].mxu0
    %653 = vmatprep.mubr.f32.mxu0 0.0
    %654 = vmatmul.mubr.f32.gmra.mrb[0].mxu0 %v268
    %v655 = vpop.f32.mrb[0].mxu0
    %v656 = vadd.f32 0.0, %v655
    %v657 = vpop.f32.mrb[0].mxu0
    %658 = vdwg.mxu0
    %659 = vst [vmem:[#allocation2] sm:$0xff] %v341
    %660 = vst [vmem:[#allocation2 + $0x8] sm:$0xff] %v346
    %661 = vst [vmem:[#allocation2 + $0x10] sm:$0xff] %v351
    %662 = vst [vmem:[#allocation2 + $0x18] sm:$0xff] %v356
    %663 = vst [vmem:[#allocation2 + $0x20] sm:$0xff] %v361
    %664 = vst [vmem:[#allocation2 + $0x28] sm:$0xff] %v366
    %665 = vst [vmem:[#allocation2 + $0x30] sm:$0xff] %v371
    %666 = vst [vmem:[#allocation2 + $0x38] sm:$0xff] %v376
    %667 = vst [vmem:[#allocation2 + $0x40] sm:$0xff] %v381
    %668 = vst [vmem:[#allocation2 + $0x48] sm:$0xff] %v386
    %669 = vst [vmem:[#allocation2 + $0x50] sm:$0xff] %v391
    %670 = vst [vmem:[#allocation2 + $0x58] sm:$0xff] %v396
    %671 = vst [vmem:[#allocation2 + $0x60] sm:$0xff] %v401
    %672 = vst [vmem:[#allocation2 + $0x68] sm:$0xff] %v406
    %673 = vst [vmem:[#allocation2 + $0x70] sm:$0xff] %v411
    %674 = vst [vmem:[#allocation2 + $0x78] sm:$0xff] %v416
    %675 = vst [vmem:[#allocation2 + $0x80] sm:$0xff] %v421
    %676 = vst [vmem:[#allocation2 + $0x88] sm:$0xff] %v426
    %677 = vst [vmem:[#allocation2 + $0x90] sm:$0xff] %v431
    %678 = vst [vmem:[#allocation2 + $0x98] sm:$0xff] %v436
    %679 = vst [vmem:[#allocation2 + $0xa0] sm:$0xff] %v441
    %680 = vst [vmem:[#allocation2 + $0xa8] sm:$0xff] %v446
    %681 = vst [vmem:[#allocation2 + $0xb0] sm:$0xff] %v451
    %682 = vst [vmem:[#allocation2 + $0xb8] sm:$0xff] %v456
    %683 = vst [vmem:[#allocation2 + $0xc0] sm:$0xff] %v461
    %684 = vst [vmem:[#allocation2 + $0xc8] sm:$0xff] %v466
    %685 = vst [vmem:[#allocation2 + $0xd0] sm:$0xff] %v471
    %686 = vst [vmem:[#allocation2 + $0xd8] sm:$0xff] %v476
    %687 = vst [vmem:[#allocation2 + $0xe0] sm:$0xff] %v481
    %688 = vst [vmem:[#allocation2 + $0xe8] sm:$0xff] %v486
    %689 = vst [vmem:[#allocation2 + $0xf0] sm:$0xff] %v491
    %690 = vst [vmem:[#allocation2 + $0xf8] sm:$0xff] %v496
    %691 = vst [vmem:[#allocation2 + $0x100] sm:$0xff] %v501
    %692 = vst [vmem:[#allocation2 + $0x108] sm:$0xff] %v506
    %693 = vst [vmem:[#allocation2 + $0x110] sm:$0xff] %v511
    %694 = vst [vmem:[#allocation2 + $0x118] sm:$0xff] %v516
    %695 = vst [vmem:[#allocation2 + $0x120] sm:$0xff] %v521
    %696 = vst [vmem:[#allocation2 + $0x128] sm:$0xff] %v526
    %697 = vst [vmem:[#allocation2 + $0x130] sm:$0xff] %v531
    %698 = vst [vmem:[#allocation2 + $0x138] sm:$0xff] %v536
    %699 = vst [vmem:[#allocation2 + $0x140] sm:$0xff] %v541
    %700 = vst [vmem:[#allocation2 + $0x148] sm:$0xff] %v546
    %701 = vst [vmem:[#allocation2 + $0x150] sm:$0xff] %v551
    %702 = vst [vmem:[#allocation2 + $0x158] sm:$0xff] %v556
    %703 = vst [vmem:[#allocation2 + $0x160] sm:$0xff] %v561
    %704 = vst [vmem:[#allocation2 + $0x168] sm:$0xff] %v566
    %705 = vst [vmem:[#allocation2 + $0x170] sm:$0xff] %v571
    %706 = vst [vmem:[#allocation2 + $0x178] sm:$0xff] %v576
    %707 = vst [vmem:[#allocation2 + $0x180] sm:$0xff] %v581
    %708 = vst [vmem:[#allocation2 + $0x188] sm:$0xff] %v586
    %709 = vst [vmem:[#allocation2 + $0x190] sm:$0xff] %v591
    %710 = vst [vmem:[#allocation2 + $0x198] sm:$0xff] %v596
    %711 = vst [vmem:[#allocation2 + $0x1a0] sm:$0xff] %v601
    %712 = vst [vmem:[#allocation2 + $0x1a8] sm:$0xff] %v606
    %713 = vst [vmem:[#allocation2 + $0x1b0] sm:$0xff] %v611
    %714 = vst [vmem:[#allocation2 + $0x1b8] sm:$0xff] %v616
    %715 = vst [vmem:[#allocation2 + $0x1c0] sm:$0xff] %v621
    %716 = vst [vmem:[#allocation2 + $0x1c8] sm:$0xff] %v626
    %717 = vst [vmem:[#allocation2 + $0x1d0] sm:$0xff] %v631
    %718 = vst [vmem:[#allocation2 + $0x1d8] sm:$0xff] %v636
    %719 = vst [vmem:[#allocation2 + $0x1e0] sm:$0xff] %v641
    %720 = vst [vmem:[#allocation2 + $0x1e8] sm:$0xff] %v646
    %721 = vst [vmem:[#allocation2 + $0x1f0] sm:$0xff] %v651
    %722 = vst [vmem:[#allocation2 + $0x1f8] sm:$0xff] %v656
    // Predicated region
    $region10: #{tpu_custom_call.1} parent=1 // pred_check
      _
    $region11: #{tpu_custom_call.1} parent=1 // pred_check_branch
      %724 = sbr.rel (0) target = $region13
    $region12: #{tpu_custom_call.1} parent=1 // pred_region
      %s726 = ssub.s32 8192, 8192
      %727 = vsyncadd [#allocation3], %s726
      %s728 = sshll.u32 [#allocation2], 4
      %s729 = int_to_ptr.vmem [resolvable:$true] %s728
      %734 = dma.vmem_to_hbm [thread:$0]  %s729, 8192, %s2, [#allocation3], 128, 128, 8
    $region13: #{tpu_custom_call.1} parent=1 // pred_fallthru
      _
    // Predicated region
    $region14: #{tpu_custom_call.1} parent=1 // pred_check
      _
    $region15: #{tpu_custom_call.1} parent=1 // pred_check_branch
      %736 = sbr.rel (0) target = $region17
    $region16: #{tpu_custom_call.1} parent=1 // pred_region
      %737 = dma.done [#allocation3], 8192
    $region17: #{tpu_custom_call.1} parent=1 // pred_fallthru
      _
    %738 = vsyncpa [#allocation3], 1

</llo_original>
